<compile_context>
chip_gen: v5e
topology: v5e:2x2
jax: 0.10.0
libtpu: 0.0.40
codegen_flags: <defaults>
</compile_context>

<pallas_src>
import functools

import jax
import jax.numpy as jnp
from jax.experimental import pallas as pl
from jax.experimental.pallas import tpu as pltpu


def _round_up(x, m):
    return ((x + m - 1) // m) * m


# ----------------------------- Pallas kernel --------------------------------
def decoder_step_kernel(emb_ref, h_ref, enc_ref,
                        w1_ref, wh_ref, wih_ref, wfc_ref, bias_ref,
                        pred_ref, hnew_ref, attn_ref):
    B, S, H = enc_ref.shape
    E = emb_ref.shape[1]
    Vp = pred_ref.shape[1]
    bf16 = jnp.bfloat16

    emb = emb_ref[...]           # (B, E)  f32
    h = h_ref[...]               # (B, H)  f32 (last-layer GRU hidden)
    enc = enc_ref[...]           # (B, S, H) f32
    biases = bias_ref[...]       # (8, Wb) f32, packed

    b_att = biases[0:1, :H]          # b1 + b2
    vw = biases[1:2, :H]             # V.weight row
    b_hn = biases[2:3, :H]           # b_hn (kept separate: multiplied by r)
    b_i3 = biases[3:4, :3 * H]       # [b_ir+b_hr | b_iz+b_hz | b_in]
    fc_b = biases[4:5, :Vp]          # fc bias (zero-padded to Vp)
    vb = biases[5:6, 0:1]            # V.bias (scalar)

    # ---------------- Bahdanau attention ----------------
    enc2d = enc.reshape(B * S, H)
    w1e = jnp.dot(enc2d.astype(bf16), w1_ref[...],
                  preferred_element_type=jnp.float32)              # (B*S, H)

    # Single matmul for everything that multiplies h: [W2 | Whr | Whz | Whn]
    hw = jnp.dot(h.astype(bf16), wh_ref[...],
                 preferred_element_type=jnp.float32)               # (B, 4H)
    w2h = hw[:, :H]                                                # attention W2(h)
    gh = hw[:, H:]                                                 # (B, 3H) GRU hidden gates

    t = jnp.tanh((w1e + b_att).reshape(B, S, H) + w2h[:, None, :])  # (B, S, H)
    scores = jnp.sum(t * vw[None, :, :], axis=-1) + vb              # (B, S)

    m = jnp.max(scores, axis=-1, keepdims=True)
    e = jnp.exp(scores - m)
    denom = jnp.sum(e, axis=-1, keepdims=True)
    attn = e * pl.reciprocal(denom, approx=True)                    # (B, S)

    # context = sum_s attn * enc   (VPU path is fine at small S; MXU at large S)
    context = jnp.sum(attn[:, :, None] * enc, axis=1)               # (B, H)

    # ---------------- GRU step (fused gates, K-split input matmul) ---------
    wih = wih_ref[...]                                              # (E+H, 3H) bf16
    gi = (jnp.dot(emb.astype(bf16), wih[:E, :],
                  preferred_element_type=jnp.float32)
          + jnp.dot(context.astype(bf16), wih[E:, :],
                    preferred_element_type=jnp.float32)
          + b_i3)                                                   # (B, 3H)

    rz = jax.nn.sigmoid(gi[:, :2 * H] + gh[:, :2 * H])              # (B, 2H)
    r = rz[:, :H]
    z = rz[:, H:]
    n = jnp.tanh(gi[:, 2 * H:] + r * (gh[:, 2 * H:] + b_hn))
    h_new = (1.0 - z) * n + z * h                                   # (B, H)

    # ---------------- output projection (lane-dense, V padded to 128) ------
    pred = jnp.dot(h_new.astype(bf16), wfc_ref[...],
                   preferred_element_type=jnp.float32) + fc_b       # (B, Vp)

    pred_ref[...] = pred
    hnew_ref[...] = h_new
    attn_ref[...] = attn


# --------------------------- parameter packing -------------------------------
def pack_decoder_params(p):
    """Pre-fuse / pre-pack / cast params once (outside the decode loop)."""
    H = p["W1"].shape[0]
    V = p["fc_w"].shape[1]
    Vp = _round_up(V, 128)
    Wb = _round_up(max(3 * H, Vp), 128)
    bf16 = jnp.bfloat16

    wh = jnp.concatenate([p["W2"], p["whr"], p["whz"], p["whn"]], axis=1).astype(bf16)   # (H, 4H)
    wih = jnp.concatenate([p["wir"], p["wiz"], p["win"]], axis=1).astype(bf16)           # (E+H, 3H)
    wfc = jnp.pad(p["fc_w"], ((0, 0), (0, Vp - V))).astype(bf16)                          # (H, Vp)

    biases = jnp.zeros((8, Wb), jnp.float32)
    biases = biases.at[0, :H].set((p["b1"] + p["b2"])[0])
    biases = biases.at[1, :H].set(p["Vw"][0])
    biases = biases.at[2, :H].set(p["bhn"][0])
    b_i3 = jnp.concatenate([p["bir"] + p["bhr"], p["biz"] + p["bhz"], p["bin"]], axis=1)[0]
    biases = biases.at[3, :3 * H].set(b_i3)
    biases = biases.at[4, :V].set(p["fc_b"][0])
    biases = biases.at[5, 0].set(p["Vb"][0, 0])

    return {
        "embedding": p["embedding"],          # (vocab, E) f32 (gather glue)
        "w1": p["W1"].astype(bf16),           # (H, H)
        "wh": wh,                             # (H, 4H)  [W2 | Whr | Whz | Whn]
        "wih": wih,                           # (E+H, 3H)
        "wfc": wfc,                           # (H, Vp)
        "biases": biases,                     # (8, Wb)  all small vectors, one DMA
    }


# ------------------------------- wrapper -------------------------------------
@functools.partial(jax.jit, static_argnames=("vocab_size",))
def decoder_forward(x_tokens, hidden, encoder_outputs, packed, *, vocab_size):
    """Mirror of Decoder.forward(x, hidden, encoder_outputs, return_attention=True).

    x_tokens: (B, 1) int32; hidden: (1, B, H) f32 (GRU, num_layers=1);
    encoder_outputs: (B, S, H) f32.
    Returns (prediction (B, 1, V), new_hidden (1, B, H), attn_weights (B, S, 1)).
    """
    B, S, H = encoder_outputs.shape
    Vp = packed["wfc"].shape[1]

    # Embedding gather (glue).
    emb = jnp.take(packed["embedding"], x_tokens[:, 0], axis=0)   # (B, E)
    h_last = hidden[-1]                                           # (B, H)

    vmem = pltpu.MemorySpace.VMEM
    kernel_inputs = (emb, h_last, encoder_outputs,
                     packed["w1"], packed["wh"], packed["wih"], packed["wfc"],
                     packed["biases"])

    out_shapes = (
        jax.ShapeDtypeStruct((B, Vp), jnp.float32),   # prediction (lane-dense, padded)
        jax.ShapeDtypeStruct((B, H), jnp.float32),    # new hidden
        jax.ShapeDtypeStruct((B, S), jnp.float32),    # attention weights
    )

    pred_p, h_new, attn = pl.pallas_call(
        decoder_step_kernel,
        out_shape=out_shapes,
        in_specs=[pl.BlockSpec(memory_space=vmem) for _ in kernel_inputs],
        out_specs=tuple(pl.BlockSpec(memory_space=vmem) for _ in out_shapes),
    )(*kernel_inputs)

    prediction = pred_p[:, :vocab_size][:, None, :]   # (B, 1, V)
    new_hidden = h_new[None, :, :]                    # (1, B, H)
    attn_weights = attn[:, :, None]                   # (B, S, 1)
    return prediction, new_hidden, attn_weights


# ------------------------ deterministic parameter init -----------------------
def init_params(key, vocab, E, H):
    ks = jax.random.split(key, 23)
    s = 0.1
    p = {
        "embedding": jax.random.normal(ks[0], (vocab, E), jnp.float32) * s,
        # attention
        "W1": jax.random.normal(ks[1], (H, H), jnp.float32) * s,
        "b1": jax.random.normal(ks[2], (1, H), jnp.float32) * s,
        "W2": jax.random.normal(ks[3], (H, H), jnp.float32) * s,
        "b2": jax.random.normal(ks[4], (1, H), jnp.float32) * s,
        "Vw": jax.random.normal(ks[5], (1, H), jnp.float32) * s,
        "Vb": jax.random.normal(ks[6], (1, 1), jnp.float32) * s,
        # GRU (gate-split, pre-transposed: input dim first)
        "wir": jax.random.normal(ks[7], (E + H, H), jnp.float32) * s,
        "wiz": jax.random.normal(ks[8], (E + H, H), jnp.float32) * s,
        "win": jax.random.normal(ks[9], (E + H, H), jnp.float32) * s,
        "whr": jax.random.normal(ks[10], (H, H), jnp.float32) * s,
        "whz": jax.random.normal(ks[11], (H, H), jnp.float32) * s,
        "whn": jax.random.normal(ks[12], (H, H), jnp.float32) * s,
        "bir": jax.random.normal(ks[13], (1, H), jnp.float32) * s,
        "biz": jax.random.normal(ks[14], (1, H), jnp.float32) * s,
        "bin": jax.random.normal(ks[15], (1, H), jnp.float32) * s,
        "bhr": jax.random.normal(ks[16], (1, H), jnp.float32) * s,
        "bhz": jax.random.normal(ks[17], (1, H), jnp.float32) * s,
        "bhn": jax.random.normal(ks[18], (1, H), jnp.float32) * s,
        # fc
        "fc_w": jax.random.normal(ks[19], (H, vocab), jnp.float32) * s,
        "fc_b": jax.random.normal(ks[20], (1, vocab), jnp.float32) * s,
    }
    return p


# --------------------------- pure-JAX reference ------------------------------
def decoder_reference(x_tokens, hidden, enc, p):
    emb = jnp.take(p["embedding"], x_tokens[:, 0], axis=0)
    h = hidden[-1]
    w1e = enc @ p["W1"] + p["b1"]
    w2h = h @ p["W2"] + p["b2"]
    t = jnp.tanh(w1e + w2h[:, None, :])
    scores = jnp.sum(t * p["Vw"][None, :, :], axis=-1) + p["Vb"]
    attn = jax.nn.softmax(scores, axis=-1)
    context = jnp.sum(attn[:, :, None] * enc, axis=1)
    rnn_in = jnp.concatenate([emb, context], axis=-1)
    r = jax.nn.sigmoid(rnn_in @ p["wir"] + p["bir"] + h @ p["whr"] + p["bhr"])
    z = jax.nn.sigmoid(rnn_in @ p["wiz"] + p["biz"] + h @ p["whz"] + p["bhz"])
    n = jnp.tanh(rnn_in @ p["win"] + p["bin"] + r * (h @ p["whn"] + p["bhn"]))
    h_new = (1.0 - z) * n + z * h
    pred = h_new @ p["fc_w"] + p["fc_b"]
    return pred[:, None, :], h_new[None, :, :], attn[:, :, None]


# ---------------------------------- main --------------------------------------
if __name__ == "__main__":
    B, S, H, E, VOCAB = 2, 8, 32, 32, 64

    key = jax.random.PRNGKey(0)
    k_tok, k_hid, k_enc, k_par = jax.random.split(key, 4)

    params = init_params(k_par, VOCAB, E, H)
    packed = pack_decoder_params(params)

    x = jax.random.randint(k_tok, (B, 1), 0, VOCAB, dtype=jnp.int32)     # decoder input token
    hidden = jax.random.normal(k_hid, (1, B, H), jnp.float32)            # (num_layers, B, H)
    encoder_outputs = jax.random.normal(k_enc, (B, S, H), jnp.float32)   # (B, S, H)

    pred, new_hidden, attn = decoder_forward(x, hidden, encoder_outputs, packed,
                                             vocab_size=VOCAB)
    jax.block_until_ready((pred, new_hidden, attn))

    # sanity check against pure-JAX f32 reference (bf16 weights/activations inside
    # the kernel -> loosened tolerance, as flagged in the review)
    pred_r, hid_r, attn_r = decoder_reference(x, hidden, encoder_outputs, params)
    assert pred.shape == (B, 1, VOCAB) and new_hidden.shape == (1, B, H) and attn.shape == (B, S, 1)
    assert jnp.allclose(pred, pred_r, atol=2e-2, rtol=2e-2)
    assert jnp.allclose(new_hidden, hid_r, atol=2e-2, rtol=2e-2)
    assert jnp.allclose(attn, attn_r, atol=2e-2, rtol=2e-2)

    print("KERNEL_OK")
</pallas_src>

<mosaic_0001>
module attributes {stable_mosaic.version = 11 : i64} {
  func.func @decoder_step_kernel(%arg0: memref<2x32xf32, #tpu.memory_space<vmem>>, %arg1: memref<2x32xf32, #tpu.memory_space<vmem>>, %arg2: memref<2x8x32xf32, #tpu.memory_space<vmem>>, %arg3: memref<32x32xbf16, #tpu.memory_space<vmem>>, %arg4: memref<32x128xbf16, #tpu.memory_space<vmem>>, %arg5: memref<64x96xbf16, #tpu.memory_space<vmem>>, %arg6: memref<32x128xbf16, #tpu.memory_space<vmem>>, %arg7: memref<8x128xf32, #tpu.memory_space<vmem>>, %arg8: memref<2x128xf32, #tpu.memory_space<vmem>>, %arg9: memref<2x32xf32, #tpu.memory_space<vmem>>, %arg10: memref<2x8xf32, #tpu.memory_space<vmem>>) attributes {dimension_semantics = [], scalar_prefetch = 0 : i64, scratch_operands = 0 : i64, tpu.core_type = #tpu.core_type<tc>} {
    %c0 = arith.constant 0 : index
    %c0_0 = arith.constant 0 : index
    %0 = vector.load %arg0[%c0, %c0_0] : memref<2x32xf32, #tpu.memory_space<vmem>>, vector<2x32xf32>
    %c0_1 = arith.constant 0 : index
    %c0_2 = arith.constant 0 : index
    %1 = vector.load %arg1[%c0_1, %c0_2] : memref<2x32xf32, #tpu.memory_space<vmem>>, vector<2x32xf32>
    %c0_3 = arith.constant 0 : index
    %c0_4 = arith.constant 0 : index
    %c0_5 = arith.constant 0 : index
    %2 = vector.load %arg2[%c0_3, %c0_4, %c0_5] : memref<2x8x32xf32, #tpu.memory_space<vmem>>, vector<2x8x32xf32>
    %c0_6 = arith.constant 0 : index
    %c0_7 = arith.constant 0 : index
    %3 = vector.load %arg7[%c0_6, %c0_7] : memref<8x128xf32, #tpu.memory_space<vmem>>, vector<8x128xf32>
    %4 = vector.extract_strided_slice %3 {offsets = [0, 0], sizes = [1, 32], strides = [1, 1]} : vector<8x128xf32> to vector<1x32xf32>
    %5 = vector.extract_strided_slice %3 {offsets = [1, 0], sizes = [1, 32], strides = [1, 1]} : vector<8x128xf32> to vector<1x32xf32>
    %6 = vector.extract_strided_slice %3 {offsets = [2, 0], sizes = [1, 32], strides = [1, 1]} : vector<8x128xf32> to vector<1x32xf32>
    %7 = vector.extract_strided_slice %3 {offsets = [3, 0], sizes = [1, 96], strides = [1, 1]} : vector<8x128xf32> to vector<1x96xf32>
    %8 = vector.extract_strided_slice %3 {offsets = [4, 0], sizes = [1, 128], strides = [1, 1]} : vector<8x128xf32> to vector<1x128xf32>
    %9 = vector.extract_strided_slice %3 {offsets = [5, 0], sizes = [1, 1], strides = [1, 1]} : vector<8x128xf32> to vector<1x1xf32>
    %10 = vector.shape_cast %2 : vector<2x8x32xf32> to vector<16x32xf32>
    %11 = arith.truncf %10 : vector<16x32xf32> to vector<16x32xbf16>
    %c0_8 = arith.constant 0 : index
    %c0_9 = arith.constant 0 : index
    %12 = vector.load %arg3[%c0_8, %c0_9] : memref<32x32xbf16, #tpu.memory_space<vmem>>, vector<32x32xbf16>
    %cst = arith.constant dense<0.000000e+00> : vector<16x32xf32>
    %13 = tpu.matmul %11, %12, %cst {dimension_numbers = #tpu.dot_dimension_numbers<[1], [0], [0], [1], [0, 0, 1, 1], [], []>} : vector<16x32xbf16>, vector<32x32xbf16>, vector<16x32xf32> -> vector<16x32xf32>
    %14 = arith.truncf %1 : vector<2x32xf32> to vector<2x32xbf16>
    %c0_10 = arith.constant 0 : index
    %c0_11 = arith.constant 0 : index
    %15 = vector.load %arg4[%c0_10, %c0_11] : memref<32x128xbf16, #tpu.memory_space<vmem>>, vector<32x128xbf16>
    %cst_12 = arith.constant dense<0.000000e+00> : vector<2x128xf32>
    %16 = tpu.matmul %14, %15, %cst_12 {dimension_numbers = #tpu.dot_dimension_numbers<[1], [0], [0], [1], [0, 0, 1, 1], [], []>} : vector<2x32xbf16>, vector<32x128xbf16>, vector<2x128xf32> -> vector<2x128xf32>
    %17 = vector.extract_strided_slice %16 {offsets = [0, 0], sizes = [2, 32], strides = [1, 1]} : vector<2x128xf32> to vector<2x32xf32>
    %18 = vector.extract_strided_slice %16 {offsets = [0, 32], sizes = [2, 96], strides = [1, 1]} : vector<2x128xf32> to vector<2x96xf32>
    %19 = vector.broadcast %4 : vector<1x32xf32> to vector<16x32xf32>
    %20 = arith.addf %13, %19 : vector<16x32xf32>
    %21 = vector.shape_cast %20 : vector<16x32xf32> to vector<2x8x32xf32>
    %22 = vector.shape_cast %17 : vector<2x32xf32> to vector<2x1x32xf32>
    %23 = vector.broadcast %22 : vector<2x1x32xf32> to vector<2x8x32xf32>
    %24 = arith.addf %21, %23 : vector<2x8x32xf32>
    %25 = math.tanh %24 : vector<2x8x32xf32>
    %26 = vector.shape_cast %5 : vector<1x32xf32> to vector<1x1x32xf32>
    %27 = vector.broadcast %26 : vector<1x1x32xf32> to vector<2x8x32xf32>
    %28 = arith.mulf %25, %27 : vector<2x8x32xf32>
    %cst_13 = arith.constant dense<0.000000e+00> : vector<2x8xf32>
    %29 = vector.multi_reduction <add>, %28, %cst_13 [2] : vector<2x8x32xf32> to vector<2x8xf32>
    %30 = vector.broadcast %9 : vector<1x1xf32> to vector<2x8xf32>
    %31 = arith.addf %29, %30 : vector<2x8xf32>
    %cst_14 = arith.constant dense<0xFF800000> : vector<2xf32>
    %32 = vector.multi_reduction <maximumf>, %31, %cst_14 [1] : vector<2x8xf32> to vector<2xf32>
    %33 = vector.shape_cast %32 : vector<2xf32> to vector<2x1xf32>
    %34 = vector.broadcast %33 : vector<2x1xf32> to vector<2x8xf32>
    %35 = arith.subf %31, %34 : vector<2x8xf32>
    %36 = math.exp %35 : vector<2x8xf32>
    %cst_15 = arith.constant dense<0.000000e+00> : vector<2xf32>
    %37 = vector.multi_reduction <add>, %36, %cst_15 [1] : vector<2x8xf32> to vector<2xf32>
    %38 = vector.shape_cast %37 : vector<2xf32> to vector<2x1xf32>
    %39 = tpu.reciprocal %38 {approx = true} : vector<2x1xf32> -> vector<2x1xf32>
    %40 = vector.broadcast %39 : vector<2x1xf32> to vector<2x8xf32>
    %41 = arith.mulf %36, %40 : vector<2x8xf32>
    %42 = vector.shape_cast %41 : vector<2x8xf32> to vector<2x8x1xf32>
    %43 = vector.broadcast %42 : vector<2x8x1xf32> to vector<2x8x32xf32>
    %44 = arith.mulf %43, %2 : vector<2x8x32xf32>
    %cst_16 = arith.constant dense<0.000000e+00> : vector<2x32xf32>
    %45 = vector.multi_reduction <add>, %44, %cst_16 [1] : vector<2x8x32xf32> to vector<2x32xf32>
    %c0_17 = arith.constant 0 : index
    %c0_18 = arith.constant 0 : index
    %46 = vector.load %arg5[%c0_17, %c0_18] : memref<64x96xbf16, #tpu.memory_space<vmem>>, vector<64x96xbf16>
    %47 = arith.truncf %0 : vector<2x32xf32> to vector<2x32xbf16>
    %48 = vector.extract_strided_slice %46 {offsets = [0, 0], sizes = [32, 96], strides = [1, 1]} : vector<64x96xbf16> to vector<32x96xbf16>
    %cst_19 = arith.constant dense<0.000000e+00> : vector<2x96xf32>
    %49 = tpu.matmul %47, %48, %cst_19 {dimension_numbers = #tpu.dot_dimension_numbers<[1], [0], [0], [1], [0, 0, 1, 1], [], []>} : vector<2x32xbf16>, vector<32x96xbf16>, vector<2x96xf32> -> vector<2x96xf32>
    %50 = arith.truncf %45 : vector<2x32xf32> to vector<2x32xbf16>
    %51 = vector.extract_strided_slice %46 {offsets = [32, 0], sizes = [32, 96], strides = [1, 1]} : vector<64x96xbf16> to vector<32x96xbf16>
    %cst_20 = arith.constant dense<0.000000e+00> : vector<2x96xf32>
    %52 = tpu.matmul %50, %51, %cst_20 {dimension_numbers = #tpu.dot_dimension_numbers<[1], [0], [0], [1], [0, 0, 1, 1], [], []>} : vector<2x32xbf16>, vector<32x96xbf16>, vector<2x96xf32> -> vector<2x96xf32>
    %53 = arith.addf %49, %52 : vector<2x96xf32>
    %54 = vector.broadcast %7 : vector<1x96xf32> to vector<2x96xf32>
    %55 = arith.addf %53, %54 : vector<2x96xf32>
    %56 = vector.extract_strided_slice %55 {offsets = [0, 0], sizes = [2, 64], strides = [1, 1]} : vector<2x96xf32> to vector<2x64xf32>
    %57 = vector.extract_strided_slice %18 {offsets = [0, 0], sizes = [2, 64], strides = [1, 1]} : vector<2x96xf32> to vector<2x64xf32>
    %58 = arith.addf %56, %57 : vector<2x64xf32>
    %59 = arith.negf %58 : vector<2x64xf32>
    %60 = math.exp %59 : vector<2x64xf32>
    %cst_21 = arith.constant 1.000000e+00 : f32
    %61 = vector.broadcast %cst_21 : f32 to vector<2x64xf32>
    %62 = arith.addf %61, %60 : vector<2x64xf32>
    %63 = arith.divf %61, %62 : vector<2x64xf32>
    %64 = vector.extract_strided_slice %63 {offsets = [0, 0], sizes = [2, 32], strides = [1, 1]} : vector<2x64xf32> to vector<2x32xf32>
    %65 = vector.extract_strided_slice %63 {offsets = [0, 32], sizes = [2, 32], strides = [1, 1]} : vector<2x64xf32> to vector<2x32xf32>
    %66 = vector.extract_strided_slice %55 {offsets = [0, 64], sizes = [2, 32], strides = [1, 1]} : vector<2x96xf32> to vector<2x32xf32>
    %67 = vector.extract_strided_slice %18 {offsets = [0, 64], sizes = [2, 32], strides = [1, 1]} : vector<2x96xf32> to vector<2x32xf32>
    %68 = vector.broadcast %6 : vector<1x32xf32> to vector<2x32xf32>
    %69 = arith.addf %67, %68 : vector<2x32xf32>
    %70 = arith.mulf %64, %69 : vector<2x32xf32>
    %71 = arith.addf %66, %70 : vector<2x32xf32>
    %72 = math.tanh %71 : vector<2x32xf32>
    %cst_22 = arith.constant 1.000000e+00 : f32
    %73 = vector.broadcast %cst_22 : f32 to vector<2x32xf32>
    %74 = arith.subf %73, %65 : vector<2x32xf32>
    %75 = arith.mulf %74, %72 : vector<2x32xf32>
    %76 = arith.mulf %65, %1 : vector<2x32xf32>
    %77 = arith.addf %75, %76 : vector<2x32xf32>
    %78 = arith.truncf %77 : vector<2x32xf32> to vector<2x32xbf16>
    %c0_23 = arith.constant 0 : index
    %c0_24 = arith.constant 0 : index
    %79 = vector.load %arg6[%c0_23, %c0_24] : memref<32x128xbf16, #tpu.memory_space<vmem>>, vector<32x128xbf16>
    %cst_25 = arith.constant dense<0.000000e+00> : vector<2x128xf32>
    %80 = tpu.matmul %78, %79, %cst_25 {dimension_numbers = #tpu.dot_dimension_numbers<[1], [0], [0], [1], [0, 0, 1, 1], [], []>} : vector<2x32xbf16>, vector<32x128xbf16>, vector<2x128xf32> -> vector<2x128xf32>
    %81 = vector.broadcast %8 : vector<1x128xf32> to vector<2x128xf32>
    %82 = arith.addf %80, %81 : vector<2x128xf32>
    %c0_26 = arith.constant 0 : index
    %c0_27 = arith.constant 0 : index
    %83 = vector.load %arg8[%c0_26, %c0_27] : memref<2x128xf32, #tpu.memory_space<vmem>>, vector<2x128xf32>
    tpu.vector_store %arg8[%c0_26, %c0_27], %82 {strides = array<i32>} : memref<2x128xf32, #tpu.memory_space<vmem>>, vector<2x128xf32>,
    %c0_28 = arith.constant 0 : index
    %c0_29 = arith.constant 0 : index
    %84 = vector.load %arg9[%c0_28, %c0_29] : memref<2x32xf32, #tpu.memory_space<vmem>>, vector<2x32xf32>
    tpu.vector_store %arg9[%c0_28, %c0_29], %77 {strides = array<i32>} : memref<2x32xf32, #tpu.memory_space<vmem>>, vector<2x32xf32>,
    %c0_30 = arith.constant 0 : index
    %c0_31 = arith.constant 0 : index
    %85 = vector.load %arg10[%c0_30, %c0_31] : memref<2x8xf32, #tpu.memory_space<vmem>>, vector<2x8xf32>
    tpu.vector_store %arg10[%c0_30, %c0_31], %41 {strides = array<i32>} : memref<2x8xf32, #tpu.memory_space<vmem>>, vector<2x8xf32>,
    return
  }
}

</mosaic_0001>

<llo_original>
// kernel: decoder_forward.1
$region0: #{decoder_forward.1}
  #allocation0 [shape = 'u32[]', space=smem, size = 0x4, offset = 0x4, fixed_abs, tag = 'smem constant byte address 0x4 - core index']
  #allocation1 [shape = 'u32[72,128]{1,0:T(1,128)}', space=vmem, size = 0x9000, scoped, tag = 'internal scratch']
  %s0 = inlined_call_operand.vmem [shape: f32[2,32], index: 0, kind: input, shape index: {}]
  %s1 = inlined_call_operand.vmem [shape: f32[2,32], index: 1, kind: input, shape index: {}]
  %s2 = inlined_call_operand.vmem [shape: f32[2,8,32], index: 2, kind: input, shape index: {}]
  %s3 = inlined_call_operand.vmem [shape: bf16[32,32], index: 3, kind: input, shape index: {}]
  %s4 = inlined_call_operand.vmem [shape: bf16[32,128], index: 4, kind: input, shape index: {}]
  %s5 = inlined_call_operand.vmem [shape: bf16[64,96], index: 5, kind: input, shape index: {}]
  %s6 = inlined_call_operand.vmem [shape: bf16[32,128], index: 6, kind: input, shape index: {}]
  %s7 = inlined_call_operand.vmem [shape: f32[8,128], index: 7, kind: input, shape index: {}]
  %s8 = inlined_call_operand.hbm [shape: f32[2,128], index: 8, kind: output, shape index: {0}]
  %s9 = inlined_call_operand.hbm [shape: f32[2,32], index: 9, kind: output, shape index: {1}]
  %s10 = inlined_call_operand.hbm [shape: f32[2,8], index: 10, kind: output, shape index: {2}]
  %11 = xla_tuple %s8, %s9, %s10
  %s12 = sld [smem:[#allocation0]]
  $region58: #{decoder_forward.1} parent=0
    _
  %s14 = ssub.s32 1, %s12
  %s15 = scalar_select 0, %s14, %s12
  $region1: #{decoder_forward.1} parent=0
    #allocation2 [shape = 'u8[1024]{0}', space=vmem, size = 0x400, scoped, tag = 'output window, operand 0, single buffered']
    #allocation3 [shape = 's32[1]{0}', space=sflag, size = 0x4, scoped, tag = 'scoped memory for decoder_forward.1']
    #allocation4 [shape = 'u8[1024]{0}', space=vmem, size = 0x400, scoped, tag = 'output window, operand 1, single buffered']
    #allocation5 [shape = 's32[1]{0}', space=sflag, size = 0x4, scoped, tag = 'scoped memory for decoder_forward.1']
    #allocation6 [shape = 'u8[1024]{0}', space=vmem, size = 0x400, scoped, tag = 'output window, operand 2, single buffered']
    %16 = vsyncpa [#allocation3], 0
    %17 = vsyncpa [#allocation5], 0
    // Predicated region
    $region2: #{decoder_forward.1} parent=1 // pred_check
      _
    $region3: #{decoder_forward.1} parent=1 // pred_check_branch
      %19 = sbr.rel (0) target = $region5
    $region4: #{decoder_forward.1} parent=1 // pred_region
      _
    $region5: #{decoder_forward.1} parent=1 // pred_fallthru
      _
    // Predicated region
    $region6: #{decoder_forward.1} parent=1 // pred_check
      _
    $region7: #{decoder_forward.1} parent=1 // pred_check_branch
      %21 = sbr.rel (0) target = $region9
    $region8: #{decoder_forward.1} parent=1 // pred_region
      _
    $region9: #{decoder_forward.1} parent=1 // pred_fallthru
      _
    // Predicated region
    $region10: #{decoder_forward.1} parent=1 // pred_check
      _
    $region11: #{decoder_forward.1} parent=1 // pred_check_branch
      %23 = sbr.rel (0) target = $region13
    $region12: #{decoder_forward.1} parent=1 // pred_region
      _
    $region13: #{decoder_forward.1} parent=1 // pred_fallthru
      _
    // Predicated region
    $region14: #{decoder_forward.1} parent=1 // pred_check
      _
    $region15: #{decoder_forward.1} parent=1 // pred_check_branch
      %25 = sbr.rel (0) target = $region17
    $region16: #{decoder_forward.1} parent=1 // pred_region
      _
    $region17: #{decoder_forward.1} parent=1 // pred_fallthru
      _
    // Predicated region
    $region18: #{decoder_forward.1} parent=1 // pred_check
      _
    $region19: #{decoder_forward.1} parent=1 // pred_check_branch
      %27 = sbr.rel (0) target = $region21
    $region20: #{decoder_forward.1} parent=1 // pred_region
      _
    $region21: #{decoder_forward.1} parent=1 // pred_fallthru
      _
    // Predicated region
    $region22: #{decoder_forward.1} parent=1 // pred_check
      _
    $region23: #{decoder_forward.1} parent=1 // pred_check_branch
      %29 = sbr.rel (0) target = $region25
    $region24: #{decoder_forward.1} parent=1 // pred_region
      _
    $region25: #{decoder_forward.1} parent=1 // pred_fallthru
      _
    // Predicated region
    $region26: #{decoder_forward.1} parent=1 // pred_check
      _
    $region27: #{decoder_forward.1} parent=1 // pred_check_branch
      %31 = sbr.rel (0) target = $region29
    $region28: #{decoder_forward.1} parent=1 // pred_region
      _
    $region29: #{decoder_forward.1} parent=1 // pred_fallthru
      _
    // Predicated region
    $region30: #{decoder_forward.1} parent=1 // pred_check
      _
    $region31: #{decoder_forward.1} parent=1 // pred_check_branch
      %33 = sbr.rel (0) target = $region33
    $region32: #{decoder_forward.1} parent=1 // pred_region
      _
    $region33: #{decoder_forward.1} parent=1 // pred_fallthru
      _
    %v35 = vld [vmem:[%s0] sm:$0x3]
    %v36 = vld [vmem:[%s1] sm:$0x3]
    %v37 = vld [vmem:[%s2] sm:$0xff]
    %v38 = vld [vmem:[%s2 + $0x8] sm:$0xff]
    %v39 = vld [vmem:[%s7] sm:$0xff]
    %v40 = vpack.c.bf16 %v38, %v37
    %v41 = vld [vmem:[%s3] sm:$0xf]
    %v42 = vld [vmem:[%s3 + $0x4] sm:$0xf]
    %v43 = vld [vmem:[%s3 + $0x8] sm:$0xf]
    %v44 = vld [vmem:[%s3 + $0xc] sm:$0xf]
    %v45 = vpack.c.bf16 %v36, %v36
    %v46 = vld [vmem:[%s4] sm:$0xf]
    %v47 = vld [vmem:[%s4 + $0x4] sm:$0xf]
    %v48 = vld [vmem:[%s4 + $0x8] sm:$0xf]
    %v49 = vld [vmem:[%s4 + $0xc] sm:$0xf]
    %v54 = vunpack.c.l.b16 %v46
    %v55 = vunpack.c.l.b16 %v47
    %v56 = vunpack.c.l.b16 %v48
    %v57 = vunpack.c.l.b16 %v49
    %v58 = vpack.c.b16 %v55, %v54
    %v59 = vpack.c.b16 %v57, %v56
    %vm62 = vcmask 261120
    %v64 = vsel %vm62, %v45, 0
    %66 = vmatpush.bf16.msra.mxu0 0
    %67 = vmatpush.bf16.msra.mxu0 0
    %68 = vmatpush.bf16.msra.mxu0 0
    %69 = vmatpush.bf16.msra.mxu0 0
    %70 = vmatpush.bf16.msra.mxu0 0
    %71 = vmatpush.bf16.msra.mxu0 0
    %72 = vmatpush.bf16.msra.mxu0 %v59
    %73 = vmatpush.bf16.msra.mxu0 %v58
    %74 = vmatmul.bf16.gmra.mxu0 %v64
    %v75 = vpop.f32.mrf.mxu0
    %v76 = vadd.f32 0.0, %v75
    %v77 = vpop.f32.mrf.mxu0
    %78 = vdwg.mxu0
    %v79 = vperm.slane %v39, 0
    %v84 = vunpack.c.l.b16 %v41
    %v85 = vunpack.c.l.b16 %v42
    %v86 = vunpack.c.l.b16 %v43
    %v87 = vunpack.c.l.b16 %v44
    %v88 = vpack.c.b16 %v85, %v84
    %v89 = vpack.c.b16 %v87, %v86
    %v93 = vsel %vm62, %v40, 0
    %95 = vmatpush.bf16.msra.mxu0 0
    %96 = vmatpush.bf16.msra.mxu0 0
    %97 = vmatpush.bf16.msra.mxu0 0
    %98 = vmatpush.bf16.msra.mxu0 0
    %99 = vmatpush.bf16.msra.mxu0 0
    %100 = vmatpush.bf16.msra.mxu0 0
    %101 = vmatpush.bf16.msra.mxu0 %v89
    %102 = vmatpush.bf16.msra.mxu0 %v88
    %103 = vmatmul.bf16.gmra.mxu0 %v93
    %v104 = vpop.f32.mrf.mxu0
    %v105 = vadd.f32 %v79, %v104
    %v106 = vpop.f32.mrf.mxu0
    %v107 = vadd.f32 %v79, %v106
    %108 = vdwg.mxu0
    %v110 = vrot.slane %v76, 1
    %v111 = vperm.slane %v76, 0
    %v112 = vperm.slane %v110, 0
    %v115 = vadd.f32 %v105, %v111
    %v116 = vadd.f32 %v107, %v112
    %v117 = vtanh.pop %v115
    %v118 = vtanh.pop %v116
    %v119 = vperm.slane %v39, 1
    %v120 = vmul.f32 %v117, %v119
    %v121 = vmul.f32 %v118, %v119
    %v122 = vsel %vm62, %v120, 0.0
    %123 = vadd.xlane.f32.xlu0 %v122
    %v124 = vpop.xlane.xlu0 %123
    %v125 = vsel %vm62, %v121, 0.0
    %126 = vadd.xlane.f32.xlu0 %v125
    %v127 = vpop.xlane.xlu0 %126
    %v129 = vrot.slane %v39, 5
    %s130 = vtos %v129
    %v131 = vstv %s130
    %v133 = vadd.f32 %v124, %v131
    %v134 = vadd.f32 %v127, %v131
    %v137 = vlaneseq
    %v138 = vand.u32 %v137, 127
    %v139 = vperm.slane %v133, %v138
    %v140 = vperm.slane %v134, %v138
    %vm141 = vcmask 1041409
    %v142 = vsel %vm141, %v140, %v139
    %vm144 = vcmask 58368
    %v145 = vsel %vm144, %v142, -inf
    %146 = vmax.xlane.f32.xlu0 %v145
    %v147 = vpop.xlane.xlu0 %146
    %v149 = vperm.slane %v147, 0
    %v150 = vperm.slane %v147, 1
    %v153 = vsub.f32 %v133, %v149
    %v154 = vsub.f32 %v134, %v150
    %v155 = vmul.f32 %v153, 1.442695
    %v156 = vpow.pop %v155
    %v157 = vmul.f32 %v154, 1.442695
    %v158 = vpow.pop %v157
    %161 = vset.pattern.permute.xlu0 0
    %162 = vperm.xlu0 %161, %v156
    %v163 = vpop.permute.xlu0 %162
    %164 = vset.pattern.permute.xlu0 0
    %165 = vperm.xlu0 %164, %v158
    %v166 = vpop.permute.xlu0 %165
    %v167 = vperm.slane %v163, %v138
    %v168 = vperm.slane %v166, %v138
    %v169 = vsel %vm141, %v168, %v167
    %v171 = vsel %vm144, %v169, 0.0
    %172 = vadd.xlane.f32.xlu0 %v171
    %v173 = vpop.xlane.xlu0 %172
    %v174 = vrcp.pop %v173
    %v176 = vperm.slane %v174, 0
    %v177 = vperm.slane %v174, 1
    %v180 = vmul.f32 %v156, %v176
    %v181 = vmul.f32 %v158, %v177
    %183 = vset.pattern.permute.xlu0 0
    %184 = vperm.xlu0 %183, %v180
    %v185 = vpop.permute.xlu0 %184
    %188 = vset.pattern.permute.xlu0 0
    %189 = vperm.xlu0 %188, %v181
    %v190 = vpop.permute.xlu0 %189
    %v192 = vmul.f32 %v185, %v37
    %v193 = vmul.f32 %v190, %v38
    %v194 = vsel %vm62, %v192, 0.0
    %v195 = vrot.slane %v194, 4
    %v196 = vadd.f32 %v194, %v195
    %v197 = vrot.slane %v196, 2
    %v198 = vadd.f32 %v196, %v197
    %v199 = vrot.slane %v198, 1
    %v200 = vadd.f32 %v198, %v199
    %v201 = vsel %vm62, %v193, 0.0
    %v202 = vrot.slane %v201, 4
    %v203 = vadd.f32 %v201, %v202
    %v204 = vrot.slane %v203, 2
    %v205 = vadd.f32 %v203, %v204
    %v206 = vrot.slane %v205, 1
    %v207 = vadd.f32 %v205, %v206
    %v208 = vld [vmem:[%s5] sm:$0xf]
    %v209 = vld [vmem:[%s5 + $0x4] sm:$0xf]
    %v210 = vld [vmem:[%s5 + $0x8] sm:$0xf]
    %v211 = vld [vmem:[%s5 + $0xc] sm:$0xf]
    %v212 = vld [vmem:[%s5 + $0x10] sm:$0xf]
    %v213 = vld [vmem:[%s5 + $0x14] sm:$0xf]
    %v214 = vld [vmem:[%s5 + $0x18] sm:$0xf]
    %v215 = vld [vmem:[%s5 + $0x1c] sm:$0xf]
    %v216 = vpack.c.bf16 %v35, %v35
    %v217 = vpack.c.bf16 %v200, %v200
    %v218 = vpack.c.bf16 %v207, %v207
    %v221 = vunpack.c.l.b16 %v217
    %v222 = vunpack.c.l.b16 %v218
    %v223 = vsel %vm141, %v222, %v221
    %v224 = vpack.c.b16 %v223, %v223
    %v229 = vunpack.c.l.b16 %v212
    %v230 = vunpack.c.l.b16 %v213
    %v231 = vunpack.c.l.b16 %v214
    %v232 = vunpack.c.l.b16 %v215
    %v233 = vpack.c.b16 %v230, %v229
    %v234 = vpack.c.b16 %v232, %v231
    %v238 = vsel %vm62, %v224, 0
    %240 = vmatpush.bf16.msra.mxu0 0
    %241 = vmatpush.bf16.msra.mxu0 0
    %242 = vmatpush.bf16.msra.mxu0 0
    %243 = vmatpush.bf16.msra.mxu0 0
    %244 = vmatpush.bf16.msra.mxu0 0
    %245 = vmatpush.bf16.msra.mxu0 0
    %246 = vmatpush.bf16.msra.mxu0 %v234
    %247 = vmatpush.bf16.msra.mxu0 %v233
    %248 = vmatmul.bf16.gmra.mxu0 %v238
    %v249 = vpop.f32.mrf.mxu0
    %v250 = vadd.f32 0.0, %v249
    %v251 = vpop.f32.mrf.mxu0
    %252 = vdwg.mxu0
    %v257 = vunpack.c.l.b16 %v208
    %v258 = vunpack.c.l.b16 %v209
    %v259 = vunpack.c.l.b16 %v210
    %v260 = vunpack.c.l.b16 %v211
    %v261 = vpack.c.b16 %v258, %v257
    %v262 = vpack.c.b16 %v260, %v259
    %v266 = vsel %vm62, %v216, 0
    %268 = vmatpush.bf16.msra.mxu0 0
    %269 = vmatpush.bf16.msra.mxu0 0
    %270 = vmatpush.bf16.msra.mxu0 0
    %271 = vmatpush.bf16.msra.mxu0 0
    %272 = vmatpush.bf16.msra.mxu0 0
    %273 = vmatpush.bf16.msra.mxu0 0
    %274 = vmatpush.bf16.msra.mxu0 %v262
    %275 = vmatpush.bf16.msra.mxu0 %v261
    %276 = vmatmul.bf16.gmra.mxu0 %v266
    %v277 = vpop.f32.mrf.mxu0
    %v278 = vadd.f32 %v250, %v277
    %v279 = vpop.f32.mrf.mxu0
    %280 = vdwg.mxu0
    %v281 = vperm.slane %v39, 3
    %v282 = vadd.f32 %v278, %v281
    %283 = vrot.lane.b32.xlu0 %v76, 96
    %v284 = vpop.permute.xlu0 %283
    %v286 = vadd.f32 %v282, %v284
    %v287 = vxor.u32 %v286, 2147483648
    %v288 = vmul.f32 %v287, 1.442695
    %v289 = vpow.pop %v288
    %v290 = vadd.f32 %v289, 1.0
    %v291 = vrcp.pop %v290
    %v292 = vmul.f32 %v290, %v291
    %v293 = vsub.f32 1.0, %v292
    %v294 = vmul.f32 %v291, %v293
    %v295 = vadd.f32 %v291, %v294
    %vm296 = vweird.f32 %v290
    %vm297 = vweird.f32 %v291
    %vm298 = vmor %vm296, %vm297
    %v299 = vsel %vm298, %v291, %v295
    %v300 = vand.u32 2147483647, %v290
    %vm301 = vcmp.eq.f32.partialorder %v300, 8.507059e+37
    %v302 = vand.u32 %v290, 2147483648
    %v303 = vor.u32 1.1754944e-38, %v302
    %v304 = vsel %vm301, %v303, %v299
    %v305 = vmul.f32 1.0, %v304
    %v306 = vperm.slane %v39, 2
    %308 = vrot.lane.b32.xlu0 %v306, 96
    %v309 = vpop.permute.xlu0 %308
    %v311 = vadd.f32 %v76, %v309
    %313 = vrot.lane.b32.xlu0 %v311, 32
    %v314 = vpop.permute.xlu0 %313
    %v316 = vmul.f32 %v305, %v314
    %318 = vrot.lane.b32.xlu0 %v316, 64
    %v319 = vpop.permute.xlu0 %318
    %v321 = vadd.f32 %v282, %v319
    %v322 = vtanh.pop %v321
    %v323 = vsub.f32 1.0, %v305
    %325 = vrot.lane.b32.xlu0 %v322, 96
    %v326 = vpop.permute.xlu0 %325
    %v328 = vmul.f32 %v323, %v326
    %330 = vrot.lane.b32.xlu0 %v36, 32
    %v331 = vpop.permute.xlu0 %330
    %v333 = vmul.f32 %v305, %v331
    %v334 = vadd.f32 %v328, %v333
    %v335 = vpack.c.bf16 %v334, %v334
    %v336 = vld [vmem:[%s6] sm:$0xf]
    %v337 = vld [vmem:[%s6 + $0x4] sm:$0xf]
    %v338 = vld [vmem:[%s6 + $0x8] sm:$0xf]
    %v339 = vld [vmem:[%s6 + $0xc] sm:$0xf]
    %v340 = vperm.slane %v39, 4
    %342 = vrot.lane.b32.xlu0 %v335, 96
    %v343 = vpop.permute.xlu0 %342
    %v348 = vunpack.c.l.b16 %v336
    %v349 = vunpack.c.l.b16 %v337
    %v350 = vunpack.c.l.b16 %v338
    %v351 = vunpack.c.l.b16 %v339
    %v352 = vpack.c.b16 %v349, %v348
    %v353 = vpack.c.b16 %v351, %v350
    %v357 = vsel %vm62, %v343, 0
    %359 = vmatpush.bf16.msra.mxu0 0
    %360 = vmatpush.bf16.msra.mxu0 0
    %361 = vmatpush.bf16.msra.mxu0 0
    %362 = vmatpush.bf16.msra.mxu0 0
    %363 = vmatpush.bf16.msra.mxu0 0
    %364 = vmatpush.bf16.msra.mxu0 0
    %365 = vmatpush.bf16.msra.mxu0 %v353
    %366 = vmatpush.bf16.msra.mxu0 %v352
    %367 = vmatmul.bf16.gmra.mxu0 %v357
    %v368 = vpop.f32.mrf.mxu0
    %v369 = vadd.f32 %v340, %v368
    %v370 = vpop.f32.mrf.mxu0
    %371 = vdwg.mxu0
    %372 = vst [vmem:[#allocation2] sm:$0x3] %v369
    %374 = vrot.lane.b32.xlu0 %v334, 96
    %v375 = vpop.permute.xlu0 %374
    %vm377 = vcmask 254976
    %378 = vst.msk [vmem:[#allocation4] sm:$0x3] %vm377, %v375
    %v379 = vperm.slane %v185, %v138
    %v380 = vperm.slane %v190, %v138
    %v381 = vsel %vm141, %v380, %v379
    %383 = vst.msk [vmem:[#allocation6] sm:$0x3] %vm144, %v381
    // Predicated region
    $region34: #{decoder_forward.1} parent=1 // pred_check
      _
    $region35: #{decoder_forward.1} parent=1 // pred_check_branch
      %385 = sbr.rel (0) target = $region37
    $region36: #{decoder_forward.1} parent=1 // pred_region
      %387 = vsyncadd [#allocation3], 0
      %s389 = sshll.u32 [#allocation2], 4
      %s390 = int_to_ptr.vmem [resolvable:$true] %s389
      %s391 = sshll.u32 %s8, 4
      %s392 = int_to_ptr.hbm [resolvable:$true] %s391
      %394 = dma.vmem_to_hbm [thread:$0]  %s390, 32, %s392, [#allocation3]
    $region37: #{decoder_forward.1} parent=1 // pred_fallthru
      _
    // Predicated region
    $region38: #{decoder_forward.1} parent=1 // pred_check
      _
    $region39: #{decoder_forward.1} parent=1 // pred_check_branch
      %396 = sbr.rel (0) target = $region41
    $region40: #{decoder_forward.1} parent=1 // pred_region
      %398 = vsyncadd [#allocation5], 0
      %s400 = sshll.u32 [#allocation4], 4
      %s401 = int_to_ptr.vmem [resolvable:$true] %s400
      %s402 = sshll.u32 %s9, 4
      %s403 = int_to_ptr.hbm [resolvable:$true] %s402
      %405 = dma.vmem_to_hbm [thread:$0]  %s401, 32, %s403, [#allocation5]
    $region41: #{decoder_forward.1} parent=1 // pred_fallthru
      _
    // Predicated region
    $region42: #{decoder_forward.1} parent=1 // pred_check
      _
    $region43: #{decoder_forward.1} parent=1 // pred_check_branch
      %407 = sbr.rel (0) target = $region45
    $region44: #{decoder_forward.1} parent=1 // pred_region
      %409 = vsyncadd [#allocation5], 0
      %s411 = sshll.u32 [#allocation6], 4
      %s412 = int_to_ptr.vmem [resolvable:$true] %s411
      %s413 = sshll.u32 %s10, 4
      %s414 = int_to_ptr.hbm [resolvable:$true] %s413
      %416 = dma.vmem_to_hbm [thread:$0]  %s412, 32, %s414, [#allocation5]
    $region45: #{decoder_forward.1} parent=1 // pred_fallthru
      _
    // Predicated region
    $region46: #{decoder_forward.1} parent=1 // pred_check
      _
    $region47: #{decoder_forward.1} parent=1 // pred_check_branch
      %418 = sbr.rel (0) target = $region49
    $region48: #{decoder_forward.1} parent=1 // pred_region
      %420 = dma.done [#allocation3], 32
    $region49: #{decoder_forward.1} parent=1 // pred_fallthru
      _
    // Predicated region
    $region50: #{decoder_forward.1} parent=1 // pred_check
      _
    $region51: #{decoder_forward.1} parent=1 // pred_check_branch
      %422 = sbr.rel (0) target = $region53
    $region52: #{decoder_forward.1} parent=1 // pred_region
      %424 = dma.done [#allocation5], 32
    $region53: #{decoder_forward.1} parent=1 // pred_fallthru
      _
    // Predicated region
    $region54: #{decoder_forward.1} parent=1 // pred_check
      _
    $region55: #{decoder_forward.1} parent=1 // pred_check_branch
      %426 = sbr.rel (0) target = $region57
    $region56: #{decoder_forward.1} parent=1 // pred_region
      %428 = dma.done [#allocation5], 32
    $region57: #{decoder_forward.1} parent=1 // pred_fallthru
      _
    %429 = vsyncpa [#allocation3], 1
    %430 = vsyncpa [#allocation5], 1

</llo_original>
